<compile_context>
chip_gen: v5e
topology: v5e:2x2
jax: 0.10.0
libtpu: 0.0.40
codegen_flags: <defaults>
</compile_context>

<pallas_src>
import math
import jax
import jax.numpy as jnp
from jax.experimental import pallas as pl
from jax.experimental.pallas import tpu as pltpu


def _pick_head_group(num_heads, head_dim, max_width=256):
    """Largest divisor g of num_heads with g*head_dim <= max_width lanes."""
    g = 1
    for cand in range(1, num_heads + 1):
        if num_heads % cand == 0 and cand * head_dim <= max_width:
            g = cand
    return g


def _pick_q_tile(seq_len, target=512):
    """Largest divisor of seq_len that is <= target (query-dim tile)."""
    if seq_len <= target:
        return seq_len
    for t in range(target, 0, -1):
        if seq_len % t == 0:
            return t
    return seq_len


def _make_kernel(g, d, q_tile, compute_dtype, approx_recip, with_probs):
    """Build the per-(head_group, batch, query_tile) kernel body."""

    def kernel(x_ref, wq_ref, wk_ref, wv_ref, qb_ref, vb_ref, *refs):
        # x_ref:      (1, S, H)      hidden states (compute dtype)
        # wq/wk/wv:   (1, H, g*d)    per-group weight slices (q already scaled)
        # qb/vb_ref:  (1, 1, g*d)    per-group biases (f32; q bias scaled)
        # ctx_ref:    (1, 1, Tq, g*d) context output block
        # probs_ref:  (1, g, Tq, S)   attention probs block (optional)
        # k_scr/v_scr:(S, g*d)       VMEM scratch, persistent across qi steps
        if with_probs:
            ctx_ref, probs_ref, k_scr, v_scr = refs
        else:
            ctx_ref, k_scr, v_scr = refs
            probs_ref = None

        qi = pl.program_id(2)

        # K / V for the whole head group: computed once per (group, batch),
        # reused across all query tiles.
        @pl.when(qi == 0)
        def _():
            x_full = x_ref[0]                                         # [S, H]
            k = jnp.dot(x_full, wk_ref[0], preferred_element_type=jnp.float32)
            v = jnp.dot(x_full, wv_ref[0],
                        preferred_element_type=jnp.float32) + vb_ref[0]
            k_scr[...] = k.astype(k_scr.dtype)
            v_scr[...] = v.astype(v_scr.dtype)

        q_start = pl.multiple_of(qi * q_tile, q_tile)
        x_q = x_ref[0, pl.ds(q_start, q_tile), :]                     # [Tq, H]
        # Fused group query projection (scale folded into weights/bias).
        q_all = (jnp.dot(x_q, wq_ref[0], preferred_element_type=jnp.float32)
                 + qb_ref[0]).astype(compute_dtype)                   # [Tq, g*d]

        k_all = k_scr[...]                                            # [S, g*d]
        v_all = v_scr[...]                                            # [S, g*d]

        ctx_parts = []
        for i in range(g):                           # static, unrolled at trace
            q_i = q_all[:, i * d:(i + 1) * d]                         # [Tq, d]
            k_i = k_all[:, i * d:(i + 1) * d]                         # [S, d]
            v_i = v_all[:, i * d:(i + 1) * d]                         # [S, d]

            # scores = q @ k^T without materializing a transposed K tile.
            scores = jax.lax.dot_general(
                q_i, k_i, dimension_numbers=(((1,), (1,)), ((), ())),
                preferred_element_type=jnp.float32)                   # [Tq, S]

            # Numerically stable softmax in f32.
            m = jnp.max(scores, axis=-1, keepdims=True)
            e = jnp.exp(scores - m)
            denom = jnp.sum(e, axis=-1, keepdims=True)
            probs = e * pl.reciprocal(denom, approx=approx_recip)

            if probs_ref is not None:
                probs_ref[0, i] = probs.astype(probs_ref.dtype)

            ctx_parts.append(jnp.dot(probs.astype(compute_dtype), v_i,
                                     preferred_element_type=jnp.float32))

        # One lane-dense [Tq, g*d] store instead of g masked d-wide stores.
        ctx = ctx_parts[0] if g == 1 else jnp.concatenate(ctx_parts, axis=-1)
        ctx_ref[0, 0] = ctx.astype(ctx_ref.dtype)

    return kernel


def videomae_self_attention(hidden_states, wq, wk, wv, q_bias, v_bias,
                            num_heads, output_attentions=False,
                            compute_dtype=jnp.bfloat16,
                            head_group_size=None, q_tile=None):
    """Forward pass of VideoMAESelfAttention (eval mode).

    hidden_states: [B, S, H]; wq/wk/wv: [H, H] (PyTorch nn.Linear convention,
    i.e. projection is x @ W^T); q_bias/v_bias: [H].
    Returns (context,) or (context, attention_probs) like the PyTorch module.
    """
    B, S, H = hidden_states.shape
    assert H % num_heads == 0, "hidden size must be divisible by num_heads"
    d = H // num_heads
    scale = 1.0 / math.sqrt(d)

    g = head_group_size if head_group_size is not None else _pick_head_group(num_heads, d)
    assert num_heads % g == 0
    n_groups = num_heads // g
    gd = g * d

    tq = q_tile if q_tile is not None else _pick_q_tile(S)
    assert S % tq == 0
    n_q = S // tq

    compute_dtype = jnp.dtype(compute_dtype)
    approx_recip = compute_dtype != jnp.dtype(jnp.float32)
    probs_dtype = compute_dtype if output_attentions else None

    # Pre-transpose + split per head group at the XLA level (once, outside the
    # grid): W^T reshaped to [nG, H, g*d] so the kernel computes x @ W directly.
    def per_group(w):
        return (w.T.reshape(H, n_groups, g, d)
                   .transpose(1, 0, 2, 3)
                   .reshape(n_groups, H, gd))

    wq_g = (per_group(wq) * scale).astype(compute_dtype)   # fold 1/sqrt(d)
    wk_g = per_group(wk).astype(compute_dtype)
    wv_g = per_group(wv).astype(compute_dtype)
    qb_g = (q_bias * scale).reshape(n_groups, 1, gd).astype(jnp.float32)
    vb_g = v_bias.reshape(n_groups, 1, gd).astype(jnp.float32)
    x = hidden_states.astype(compute_dtype)

    out_shapes = [jax.ShapeDtypeStruct((B, n_groups, S, gd), hidden_states.dtype)]
    out_specs = [pl.BlockSpec((1, 1, tq, gd), lambda hg, b, qi: (b, hg, qi, 0))]
    if output_attentions:
        out_shapes.append(jax.ShapeDtypeStruct((B, num_heads, S, S), probs_dtype))
        out_specs.append(
            pl.BlockSpec((1, g, tq, S), lambda hg, b, qi: (b, hg, qi, 0)))

    kernel = _make_kernel(g, d, tq, compute_dtype, approx_recip,
                          with_probs=output_attentions)

    grid_spec = pltpu.PrefetchScalarGridSpec(
        num_scalar_prefetch=0,
        grid=(n_groups, B, n_q),
        in_specs=[
            # hidden states: one DMA per (group, batch), reused across qi.
            pl.BlockSpec((1, S, H), lambda hg, b, qi: (b, 0, 0)),
            # per-group weights / biases: constant along inner axes -> resident.
            pl.BlockSpec((1, H, gd), lambda hg, b, qi: (hg, 0, 0)),
            pl.BlockSpec((1, H, gd), lambda hg, b, qi: (hg, 0, 0)),
            pl.BlockSpec((1, H, gd), lambda hg, b, qi: (hg, 0, 0)),
            pl.BlockSpec((1, 1, gd), lambda hg, b, qi: (hg, 0, 0)),
            pl.BlockSpec((1, 1, gd), lambda hg, b, qi: (hg, 0, 0)),
        ],
        out_specs=tuple(out_specs),
        scratch_shapes=[
            pltpu.VMEM((S, gd), compute_dtype),   # K for the head group
            pltpu.VMEM((S, gd), compute_dtype),   # V for the head group
        ],
    )

    results = pl.pallas_call(
        kernel,
        out_shape=tuple(out_shapes),
        grid_spec=grid_spec,
        compiler_params=pltpu.CompilerParams(
            dimension_semantics=("parallel", "parallel", "arbitrary"),
            vmem_limit_bytes=48 * 1024 * 1024),   # > default scoped, < v7x phys
    )(x, wq_g, wk_g, wv_g, qb_g, vb_g)

    if not isinstance(results, (tuple, list)):
        results = (results,)
    ctx_groups = results[0]                                  # [B, nG, S, g*d]

    # Head merge ([B, nG, S, g*d] -> [B, S, H]) once in the XLA wrapper so the
    # kernel's stores stay full-block / lane-dense per head group.
    context = (ctx_groups.reshape(B, n_groups, S, g, d)
               .transpose(0, 2, 1, 3, 4)
               .reshape(B, S, H))

    if output_attentions:
        return context, results[1]
    return (context,)


def reference_jax(hidden_states, wq, wk, wv, q_bias, v_bias, num_heads):
    """Plain-JAX reference mirroring the PyTorch forward (eval mode)."""
    B, S, H = hidden_states.shape
    d = H // num_heads
    q = hidden_states @ wq.T + q_bias
    k = hidden_states @ wk.T                  # k_bias is zeros in the module
    v = hidden_states @ wv.T + v_bias

    def split(t):
        return t.reshape(B, S, num_heads, d).transpose(0, 2, 1, 3)   # [B,nH,S,d]

    qh, kh, vh = split(q), split(k), split(v)
    scores = jnp.einsum('bhqd,bhkd->bhqk', qh, kh) / math.sqrt(d)
    probs = jax.nn.softmax(scores, axis=-1)
    ctx = jnp.einsum('bhqk,bhkd->bhqd', probs, vh)
    ctx = ctx.transpose(0, 2, 1, 3).reshape(B, S, H)
    return ctx, probs


if __name__ == "__main__":
    B, S, H, NUM_HEADS = 2, 8, 32, 4

    key = jax.random.PRNGKey(0)
    kx, kq, kk, kv, kqb, kvb = jax.random.split(key, 6)

    hidden_states = jax.random.normal(kx, (B, S, H), dtype=jnp.float32)
    wq = jax.random.normal(kq, (H, H), dtype=jnp.float32) * 0.05
    wk = jax.random.normal(kk, (H, H), dtype=jnp.float32) * 0.05
    wv = jax.random.normal(kv, (H, H), dtype=jnp.float32) * 0.05
    q_bias = jax.random.normal(kqb, (H,), dtype=jnp.float32) * 0.01
    v_bias = jax.random.normal(kvb, (H,), dtype=jnp.float32) * 0.01

    ref_ctx, ref_probs = reference_jax(hidden_states, wq, wk, wv,
                                       q_bias, v_bias, NUM_HEADS)

    # 1) f32 compute path (exact reciprocal) -- tight-tolerance correctness.
    ctx32, probs32 = videomae_self_attention(
        hidden_states, wq, wk, wv, q_bias, v_bias, NUM_HEADS,
        output_attentions=True, compute_dtype=jnp.float32)
    jax.block_until_ready(ctx32)
    assert jnp.allclose(ctx32, ref_ctx, atol=1e-5, rtol=1e-5), \
        "context mismatch (f32 path)"
    assert jnp.allclose(probs32.astype(jnp.float32), ref_probs,
                        atol=1e-5, rtol=1e-5), "probs mismatch (f32 path)"

    # 2) bf16 MXU path with probs emitted (output_attentions=True).
    ctx_bf, probs_bf = videomae_self_attention(
        hidden_states, wq, wk, wv, q_bias, v_bias, NUM_HEADS,
        output_attentions=True)
    jax.block_until_ready(ctx_bf)
    jax.block_until_ready(probs_bf)
    assert jnp.allclose(ctx_bf, ref_ctx, atol=2e-2, rtol=2e-2), \
        "context mismatch (bf16 path)"
    assert jnp.allclose(probs_bf.astype(jnp.float32), ref_probs,
                        atol=2e-2, rtol=2e-2), "probs mismatch (bf16 path)"

    # 3) bf16 fast path: no probs written to HBM at all.
    (ctx_fast,) = videomae_self_attention(
        hidden_states, wq, wk, wv, q_bias, v_bias, NUM_HEADS,
        output_attentions=False)
    jax.block_until_ready(ctx_fast)
    assert jnp.allclose(ctx_fast, ref_ctx, atol=2e-2, rtol=2e-2), \
        "context mismatch (bf16 fast path)"

    print("KERNEL_OK")
</pallas_src>

<mosaic_0001>
module attributes {stable_mosaic.version = 11 : i64} {
  func.func @kernel(%arg0: i32, %arg1: i32, %arg2: i32, %arg3: memref<1x8x32xf32, #tpu.memory_space<vmem>>, %arg4: memref<1x32x32xf32, #tpu.memory_space<vmem>>, %arg5: memref<1x32x32xf32, #tpu.memory_space<vmem>>, %arg6: memref<1x32x32xf32, #tpu.memory_space<vmem>>, %arg7: memref<1x1x32xf32, #tpu.memory_space<vmem>>, %arg8: memref<1x1x32xf32, #tpu.memory_space<vmem>>, %arg9: memref<1x1x8x32xf32, #tpu.memory_space<vmem>>, %arg10: memref<1x4x8x8xf32, #tpu.memory_space<vmem>>, %arg11: memref<8x32xf32, #tpu.memory_space<vmem>>, %arg12: memref<8x32xf32, #tpu.memory_space<vmem>>) attributes {dimension_semantics = [#tpu.dimension_semantics<parallel>, #tpu.dimension_semantics<parallel>, #tpu.dimension_semantics<arbitrary>], iteration_bounds = array<i64: 1, 2, 1>, scalar_prefetch = 0 : i64, scratch_operands = 2 : i64, tpu.core_type = #tpu.core_type<tc>, window_params = [{transform_indices = @transform_0, window_bounds = array<i64: 1, 8, 32>}, {transform_indices = @transform_1, window_bounds = array<i64: 1, 32, 32>}, {transform_indices = @transform_2, window_bounds = array<i64: 1, 32, 32>}, {transform_indices = @transform_3, window_bounds = array<i64: 1, 32, 32>}, {transform_indices = @transform_4, window_bounds = array<i64: 1, 1, 32>}, {transform_indices = @transform_5, window_bounds = array<i64: 1, 1, 32>}, {transform_indices = @transform_6, window_bounds = array<i64: 1, 1, 8, 32>}, {transform_indices = @transform_7, window_bounds = array<i64: 1, 4, 8, 8>}]} {
    %c0_i32 = arith.constant 0 : i32
    %0 = arith.cmpi eq, %arg2, %c0_i32 : i32
    %1 = arith.extui %0 : i1 to i32
    %c0_i32_0 = arith.constant 0 : i32
    %2 = arith.cmpi ne, %1, %c0_i32_0 : i32
    scf.if %2 {
      %c0_45 = arith.constant 0 : index
      %c0_46 = arith.constant 0 : index
      %c0_47 = arith.constant 0 : index
      %93 = vector.load %arg3[%c0_45, %c0_46, %c0_47] : memref<1x8x32xf32, #tpu.memory_space<vmem>>, vector<1x8x32xf32>
      %94 = vector.shape_cast %93 : vector<1x8x32xf32> to vector<8x32xf32>
      %c0_48 = arith.constant 0 : index
      %c0_49 = arith.constant 0 : index
      %c0_50 = arith.constant 0 : index
      %95 = vector.load %arg5[%c0_48, %c0_49, %c0_50] : memref<1x32x32xf32, #tpu.memory_space<vmem>>, vector<1x32x32xf32>
      %96 = vector.shape_cast %95 : vector<1x32x32xf32> to vector<32x32xf32>
      %cst_51 = arith.constant dense<0.000000e+00> : vector<8x32xf32>
      %97 = tpu.matmul %94, %96, %cst_51 {dimension_numbers = #tpu.dot_dimension_numbers<[1], [0], [0], [1], [0, 0, 1, 1], [], []>} : vector<8x32xf32>, vector<32x32xf32>, vector<8x32xf32> -> vector<8x32xf32>
      %c0_52 = arith.constant 0 : index
      %c0_53 = arith.constant 0 : index
      %c0_54 = arith.constant 0 : index
      %98 = vector.load %arg6[%c0_52, %c0_53, %c0_54] : memref<1x32x32xf32, #tpu.memory_space<vmem>>, vector<1x32x32xf32>
      %99 = vector.shape_cast %98 : vector<1x32x32xf32> to vector<32x32xf32>
      %cst_55 = arith.constant dense<0.000000e+00> : vector<8x32xf32>
      %100 = tpu.matmul %94, %99, %cst_55 {dimension_numbers = #tpu.dot_dimension_numbers<[1], [0], [0], [1], [0, 0, 1, 1], [], []>} : vector<8x32xf32>, vector<32x32xf32>, vector<8x32xf32> -> vector<8x32xf32>
      %c0_56 = arith.constant 0 : index
      %c0_57 = arith.constant 0 : index
      %c0_58 = arith.constant 0 : index
      %101 = vector.load %arg8[%c0_56, %c0_57, %c0_58] : memref<1x1x32xf32, #tpu.memory_space<vmem>>, vector<1x1x32xf32>
      %102 = vector.shape_cast %101 : vector<1x1x32xf32> to vector<1x32xf32>
      %103 = vector.broadcast %102 : vector<1x32xf32> to vector<8x32xf32>
      %104 = arith.addf %100, %103 : vector<8x32xf32>
      %c0_59 = arith.constant 0 : index
      %c0_60 = arith.constant 0 : index
      %105 = vector.load %arg11[%c0_59, %c0_60] : memref<8x32xf32, #tpu.memory_space<vmem>>, vector<8x32xf32>
      tpu.vector_store %arg11[%c0_59, %c0_60], %97 {strides = array<i32>} : memref<8x32xf32, #tpu.memory_space<vmem>>, vector<8x32xf32>,
      %c0_61 = arith.constant 0 : index
      %c0_62 = arith.constant 0 : index
      %106 = vector.load %arg12[%c0_61, %c0_62] : memref<8x32xf32, #tpu.memory_space<vmem>>, vector<8x32xf32>
      tpu.vector_store %arg12[%c0_61, %c0_62], %104 {strides = array<i32>} : memref<8x32xf32, #tpu.memory_space<vmem>>, vector<8x32xf32>,
    } else {
    }
    %c8_i32 = arith.constant 8 : i32
    %3 = arith.muli %arg2, %c8_i32 : i32
    %4 = tpu.assume_multiple %3, 8 : i32
    %c0 = arith.constant 0 : index
    %5 = arith.index_cast %4 : i32 to index
    %c0_1 = arith.constant 0 : index
    %6 = vector.load %arg3[%c0, %5, %c0_1] : memref<1x8x32xf32, #tpu.memory_space<vmem>>, vector<1x8x32xf32>
    %7 = vector.shape_cast %6 : vector<1x8x32xf32> to vector<8x32xf32>
    %c0_2 = arith.constant 0 : index
    %c0_3 = arith.constant 0 : index
    %c0_4 = arith.constant 0 : index
    %8 = vector.load %arg4[%c0_2, %c0_3, %c0_4] : memref<1x32x32xf32, #tpu.memory_space<vmem>>, vector<1x32x32xf32>
    %9 = vector.shape_cast %8 : vector<1x32x32xf32> to vector<32x32xf32>
    %cst = arith.constant dense<0.000000e+00> : vector<8x32xf32>
    %10 = tpu.matmul %7, %9, %cst {dimension_numbers = #tpu.dot_dimension_numbers<[1], [0], [0], [1], [0, 0, 1, 1], [], []>} : vector<8x32xf32>, vector<32x32xf32>, vector<8x32xf32> -> vector<8x32xf32>
    %c0_5 = arith.constant 0 : index
    %c0_6 = arith.constant 0 : index
    %c0_7 = arith.constant 0 : index
    %11 = vector.load %arg7[%c0_5, %c0_6, %c0_7] : memref<1x1x32xf32, #tpu.memory_space<vmem>>, vector<1x1x32xf32>
    %12 = vector.shape_cast %11 : vector<1x1x32xf32> to vector<1x32xf32>
    %13 = vector.broadcast %12 : vector<1x32xf32> to vector<8x32xf32>
    %14 = arith.addf %10, %13 : vector<8x32xf32>
    %c0_8 = arith.constant 0 : index
    %c0_9 = arith.constant 0 : index
    %15 = vector.load %arg11[%c0_8, %c0_9] : memref<8x32xf32, #tpu.memory_space<vmem>>, vector<8x32xf32>
    %c0_10 = arith.constant 0 : index
    %c0_11 = arith.constant 0 : index
    %16 = vector.load %arg12[%c0_10, %c0_11] : memref<8x32xf32, #tpu.memory_space<vmem>>, vector<8x32xf32>
    %17 = vector.extract_strided_slice %14 {offsets = [0, 0], sizes = [8, 8], strides = [1, 1]} : vector<8x32xf32> to vector<8x8xf32>
    %18 = vector.extract_strided_slice %15 {offsets = [0, 0], sizes = [8, 8], strides = [1, 1]} : vector<8x32xf32> to vector<8x8xf32>
    %19 = vector.extract_strided_slice %16 {offsets = [0, 0], sizes = [8, 8], strides = [1, 1]} : vector<8x32xf32> to vector<8x8xf32>
    %cst_12 = arith.constant dense<0.000000e+00> : vector<8x8xf32>
    %20 = tpu.matmul %17, %18, %cst_12 {dimension_numbers = #tpu.dot_dimension_numbers<[1], [1], [0], [0], [0, 0, 1, 0], [], []>} : vector<8x8xf32>, vector<8x8xf32>, vector<8x8xf32> -> vector<8x8xf32>
    %cst_13 = arith.constant dense<0xFF800000> : vector<8xf32>
    %21 = vector.multi_reduction <maximumf>, %20, %cst_13 [1] : vector<8x8xf32> to vector<8xf32>
    %22 = vector.shape_cast %21 : vector<8xf32> to vector<8x1xf32>
    %23 = vector.broadcast %22 : vector<8x1xf32> to vector<8x8xf32>
    %24 = arith.subf %20, %23 : vector<8x8xf32>
    %25 = math.exp %24 : vector<8x8xf32>
    %cst_14 = arith.constant dense<0.000000e+00> : vector<8xf32>
    %26 = vector.multi_reduction <add>, %25, %cst_14 [1] : vector<8x8xf32> to vector<8xf32>
    %27 = vector.shape_cast %26 : vector<8xf32> to vector<8x1xf32>
    %28 = tpu.reciprocal %27 : vector<8x1xf32> -> vector<8x1xf32>
    %29 = vector.broadcast %28 : vector<8x1xf32> to vector<8x8xf32>
    %30 = arith.mulf %25, %29 : vector<8x8xf32>
    %c0_15 = arith.constant 0 : index
    %c0_16 = arith.constant 0 : index
    %c0_17 = arith.constant 0 : index
    %c0_18 = arith.constant 0 : index
    %31 = vector.load %arg10[%c0_15, %c0_16, %c0_17, %c0_18] : memref<1x4x8x8xf32, #tpu.memory_space<vmem>>, vector<1x1x8x8xf32>
    %32 = vector.shape_cast %31 : vector<1x1x8x8xf32> to vector<8x8xf32>
    %33 = vector.shape_cast %30 : vector<8x8xf32> to vector<1x1x8x8xf32>
    tpu.vector_store %arg10[%c0_15, %c0_16, %c0_17, %c0_18], %33 {strides = array<i32>} : memref<1x4x8x8xf32, #tpu.memory_space<vmem>>, vector<1x1x8x8xf32>,
    %cst_19 = arith.constant dense<0.000000e+00> : vector<8x8xf32>
    %34 = tpu.matmul %30, %19, %cst_19 {dimension_numbers = #tpu.dot_dimension_numbers<[1], [0], [0], [1], [0, 0, 1, 1], [], []>} : vector<8x8xf32>, vector<8x8xf32>, vector<8x8xf32> -> vector<8x8xf32>
    %35 = vector.extract_strided_slice %14 {offsets = [0, 8], sizes = [8, 8], strides = [1, 1]} : vector<8x32xf32> to vector<8x8xf32>
    %36 = vector.extract_strided_slice %15 {offsets = [0, 8], sizes = [8, 8], strides = [1, 1]} : vector<8x32xf32> to vector<8x8xf32>
    %37 = vector.extract_strided_slice %16 {offsets = [0, 8], sizes = [8, 8], strides = [1, 1]} : vector<8x32xf32> to vector<8x8xf32>
    %cst_20 = arith.constant dense<0.000000e+00> : vector<8x8xf32>
    %38 = tpu.matmul %35, %36, %cst_20 {dimension_numbers = #tpu.dot_dimension_numbers<[1], [1], [0], [0], [0, 0, 1, 0], [], []>} : vector<8x8xf32>, vector<8x8xf32>, vector<8x8xf32> -> vector<8x8xf32>
    %cst_21 = arith.constant dense<0xFF800000> : vector<8xf32>
    %39 = vector.multi_reduction <maximumf>, %38, %cst_21 [1] : vector<8x8xf32> to vector<8xf32>
    %40 = vector.shape_cast %39 : vector<8xf32> to vector<8x1xf32>
    %41 = vector.broadcast %40 : vector<8x1xf32> to vector<8x8xf32>
    %42 = arith.subf %38, %41 : vector<8x8xf32>
    %43 = math.exp %42 : vector<8x8xf32>
    %cst_22 = arith.constant dense<0.000000e+00> : vector<8xf32>
    %44 = vector.multi_reduction <add>, %43, %cst_22 [1] : vector<8x8xf32> to vector<8xf32>
    %45 = vector.shape_cast %44 : vector<8xf32> to vector<8x1xf32>
    %46 = tpu.reciprocal %45 : vector<8x1xf32> -> vector<8x1xf32>
    %47 = vector.broadcast %46 : vector<8x1xf32> to vector<8x8xf32>
    %48 = arith.mulf %43, %47 : vector<8x8xf32>
    %c0_23 = arith.constant 0 : index
    %c1 = arith.constant 1 : index
    %c0_24 = arith.constant 0 : index
    %c0_25 = arith.constant 0 : index
    %49 = vector.load %arg10[%c0_23, %c1, %c0_24, %c0_25] : memref<1x4x8x8xf32, #tpu.memory_space<vmem>>, vector<1x1x8x8xf32>
    %50 = vector.shape_cast %49 : vector<1x1x8x8xf32> to vector<8x8xf32>
    %51 = vector.shape_cast %48 : vector<8x8xf32> to vector<1x1x8x8xf32>
    tpu.vector_store %arg10[%c0_23, %c1, %c0_24, %c0_25], %51 {strides = array<i32>} : memref<1x4x8x8xf32, #tpu.memory_space<vmem>>, vector<1x1x8x8xf32>,
    %cst_26 = arith.constant dense<0.000000e+00> : vector<8x8xf32>
    %52 = tpu.matmul %48, %37, %cst_26 {dimension_numbers = #tpu.dot_dimension_numbers<[1], [0], [0], [1], [0, 0, 1, 1], [], []>} : vector<8x8xf32>, vector<8x8xf32>, vector<8x8xf32> -> vector<8x8xf32>
    %53 = vector.extract_strided_slice %14 {offsets = [0, 16], sizes = [8, 8], strides = [1, 1]} : vector<8x32xf32> to vector<8x8xf32>
    %54 = vector.extract_strided_slice %15 {offsets = [0, 16], sizes = [8, 8], strides = [1, 1]} : vector<8x32xf32> to vector<8x8xf32>
    %55 = vector.extract_strided_slice %16 {offsets = [0, 16], sizes = [8, 8], strides = [1, 1]} : vector<8x32xf32> to vector<8x8xf32>
    %cst_27 = arith.constant dense<0.000000e+00> : vector<8x8xf32>
    %56 = tpu.matmul %53, %54, %cst_27 {dimension_numbers = #tpu.dot_dimension_numbers<[1], [1], [0], [0], [0, 0, 1, 0], [], []>} : vector<8x8xf32>, vector<8x8xf32>, vector<8x8xf32> -> vector<8x8xf32>
    %cst_28 = arith.constant dense<0xFF800000> : vector<8xf32>
    %57 = vector.multi_reduction <maximumf>, %56, %cst_28 [1] : vector<8x8xf32> to vector<8xf32>
    %58 = vector.shape_cast %57 : vector<8xf32> to vector<8x1xf32>
    %59 = vector.broadcast %58 : vector<8x1xf32> to vector<8x8xf32>
    %60 = arith.subf %56, %59 : vector<8x8xf32>
    %61 = math.exp %60 : vector<8x8xf32>
    %cst_29 = arith.constant dense<0.000000e+00> : vector<8xf32>
    %62 = vector.multi_reduction <add>, %61, %cst_29 [1] : vector<8x8xf32> to vector<8xf32>
    %63 = vector.shape_cast %62 : vector<8xf32> to vector<8x1xf32>
    %64 = tpu.reciprocal %63 : vector<8x1xf32> -> vector<8x1xf32>
    %65 = vector.broadcast %64 : vector<8x1xf32> to vector<8x8xf32>
    %66 = arith.mulf %61, %65 : vector<8x8xf32>
    %c0_30 = arith.constant 0 : index
    %c2 = arith.constant 2 : index
    %c0_31 = arith.constant 0 : index
    %c0_32 = arith.constant 0 : index
    %67 = vector.load %arg10[%c0_30, %c2, %c0_31, %c0_32] : memref<1x4x8x8xf32, #tpu.memory_space<vmem>>, vector<1x1x8x8xf32>
    %68 = vector.shape_cast %67 : vector<1x1x8x8xf32> to vector<8x8xf32>
    %69 = vector.shape_cast %66 : vector<8x8xf32> to vector<1x1x8x8xf32>
    tpu.vector_store %arg10[%c0_30, %c2, %c0_31, %c0_32], %69 {strides = array<i32>} : memref<1x4x8x8xf32, #tpu.memory_space<vmem>>, vector<1x1x8x8xf32>,
    %cst_33 = arith.constant dense<0.000000e+00> : vector<8x8xf32>
    %70 = tpu.matmul %66, %55, %cst_33 {dimension_numbers = #tpu.dot_dimension_numbers<[1], [0], [0], [1], [0, 0, 1, 1], [], []>} : vector<8x8xf32>, vector<8x8xf32>, vector<8x8xf32> -> vector<8x8xf32>
    %71 = vector.extract_strided_slice %14 {offsets = [0, 24], sizes = [8, 8], strides = [1, 1]} : vector<8x32xf32> to vector<8x8xf32>
    %72 = vector.extract_strided_slice %15 {offsets = [0, 24], sizes = [8, 8], strides = [1, 1]} : vector<8x32xf32> to vector<8x8xf32>
    %73 = vector.extract_strided_slice %16 {offsets = [0, 24], sizes = [8, 8], strides = [1, 1]} : vector<8x32xf32> to vector<8x8xf32>
    %cst_34 = arith.constant dense<0.000000e+00> : vector<8x8xf32>
    %74 = tpu.matmul %71, %72, %cst_34 {dimension_numbers = #tpu.dot_dimension_numbers<[1], [1], [0], [0], [0, 0, 1, 0], [], []>} : vector<8x8xf32>, vector<8x8xf32>, vector<8x8xf32> -> vector<8x8xf32>
    %cst_35 = arith.constant dense<0xFF800000> : vector<8xf32>
    %75 = vector.multi_reduction <maximumf>, %74, %cst_35 [1] : vector<8x8xf32> to vector<8xf32>
    %76 = vector.shape_cast %75 : vector<8xf32> to vector<8x1xf32>
    %77 = vector.broadcast %76 : vector<8x1xf32> to vector<8x8xf32>
    %78 = arith.subf %74, %77 : vector<8x8xf32>
    %79 = math.exp %78 : vector<8x8xf32>
    %cst_36 = arith.constant dense<0.000000e+00> : vector<8xf32>
    %80 = vector.multi_reduction <add>, %79, %cst_36 [1] : vector<8x8xf32> to vector<8xf32>
    %81 = vector.shape_cast %80 : vector<8xf32> to vector<8x1xf32>
    %82 = tpu.reciprocal %81 : vector<8x1xf32> -> vector<8x1xf32>
    %83 = vector.broadcast %82 : vector<8x1xf32> to vector<8x8xf32>
    %84 = arith.mulf %79, %83 : vector<8x8xf32>
    %c0_37 = arith.constant 0 : index
    %c3 = arith.constant 3 : index
    %c0_38 = arith.constant 0 : index
    %c0_39 = arith.constant 0 : index
    %85 = vector.load %arg10[%c0_37, %c3, %c0_38, %c0_39] : memref<1x4x8x8xf32, #tpu.memory_space<vmem>>, vector<1x1x8x8xf32>
    %86 = vector.shape_cast %85 : vector<1x1x8x8xf32> to vector<8x8xf32>
    %87 = vector.shape_cast %84 : vector<8x8xf32> to vector<1x1x8x8xf32>
    tpu.vector_store %arg10[%c0_37, %c3, %c0_38, %c0_39], %87 {strides = array<i32>} : memref<1x4x8x8xf32, #tpu.memory_space<vmem>>, vector<1x1x8x8xf32>,
    %cst_40 = arith.constant dense<0.000000e+00> : vector<8x8xf32>
    %88 = tpu.matmul %84, %73, %cst_40 {dimension_numbers = #tpu.dot_dimension_numbers<[1], [0], [0], [1], [0, 0, 1, 1], [], []>} : vector<8x8xf32>, vector<8x8xf32>, vector<8x8xf32> -> vector<8x8xf32>
    %89 = tpu.concatenate %34, %52, %70, %88 in 1 : vector<8x8xf32>, vector<8x8xf32>, vector<8x8xf32>, vector<8x8xf32> -> vector<8x32xf32>
    %c0_41 = arith.constant 0 : index
    %c0_42 = arith.constant 0 : index
    %c0_43 = arith.constant 0 : index
    %c0_44 = arith.constant 0 : index
    %90 = vector.load %arg9[%c0_41, %c0_42, %c0_43, %c0_44] : memref<1x1x8x32xf32, #tpu.memory_space<vmem>>, vector<1x1x8x32xf32>
    %91 = vector.shape_cast %90 : vector<1x1x8x32xf32> to vector<8x32xf32>
    %92 = vector.shape_cast %89 : vector<8x32xf32> to vector<1x1x8x32xf32>
    tpu.vector_store %arg9[%c0_41, %c0_42, %c0_43, %c0_44], %92 {strides = array<i32>} : memref<1x1x8x32xf32, #tpu.memory_space<vmem>>, vector<1x1x8x32xf32>,
    return
  }
  func.func @transform_0(%arg0: i32, %arg1: i32, %arg2: i32) -> (i32, i32, i32) {
    %c0_i32 = arith.constant 0 : i32
    %c0_i32_0 = arith.constant 0 : i32
    %c0_i32_1 = arith.constant 0 : i32
    return %arg1, %c0_i32, %c0_i32_0 : i32, i32, i32
  }
  func.func @transform_1(%arg0: i32, %arg1: i32, %arg2: i32) -> (i32, i32, i32) {
    %c0_i32 = arith.constant 0 : i32
    %c0_i32_0 = arith.constant 0 : i32
    %c0_i32_1 = arith.constant 0 : i32
    return %arg0, %c0_i32, %c0_i32_0 : i32, i32, i32
  }
  func.func @transform_2(%arg0: i32, %arg1: i32, %arg2: i32) -> (i32, i32, i32) {
    %c0_i32 = arith.constant 0 : i32
    %c0_i32_0 = arith.constant 0 : i32
    %c0_i32_1 = arith.constant 0 : i32
    return %arg0, %c0_i32, %c0_i32_0 : i32, i32, i32
  }
  func.func @transform_3(%arg0: i32, %arg1: i32, %arg2: i32) -> (i32, i32, i32) {
    %c0_i32 = arith.constant 0 : i32
    %c0_i32_0 = arith.constant 0 : i32
    %c0_i32_1 = arith.constant 0 : i32
    return %arg0, %c0_i32, %c0_i32_0 : i32, i32, i32
  }
  func.func @transform_4(%arg0: i32, %arg1: i32, %arg2: i32) -> (i32, i32, i32) {
    %c0_i32 = arith.constant 0 : i32
    %c0_i32_0 = arith.constant 0 : i32
    %c0_i32_1 = arith.constant 0 : i32
    return %arg0, %c0_i32, %c0_i32_0 : i32, i32, i32
  }
  func.func @transform_5(%arg0: i32, %arg1: i32, %arg2: i32) -> (i32, i32, i32) {
    %c0_i32 = arith.constant 0 : i32
    %c0_i32_0 = arith.constant 0 : i32
    %c0_i32_1 = arith.constant 0 : i32
    return %arg0, %c0_i32, %c0_i32_0 : i32, i32, i32
  }
  func.func @transform_6(%arg0: i32, %arg1: i32, %arg2: i32) -> (i32, i32, i32, i32) {
    %c0_i32 = arith.constant 0 : i32
    %c0_i32_0 = arith.constant 0 : i32
    return %arg1, %arg0, %arg2, %c0_i32 : i32, i32, i32, i32
  }
  func.func @transform_7(%arg0: i32, %arg1: i32, %arg2: i32) -> (i32, i32, i32, i32) {
    %c0_i32 = arith.constant 0 : i32
    %c0_i32_0 = arith.constant 0 : i32
    return %arg1, %arg0, %arg2, %c0_i32 : i32, i32, i32, i32
  }
}

</mosaic_0001>

<llo_original>
// kernel: tpu_custom_call.1
$region0: #{tpu_custom_call.1}
  #allocation0 [shape = 'u32[]', space=smem, size = 0x4, offset = 0x4, fixed_abs, tag = 'smem constant byte address 0x4 - core index']
  #allocation1 [shape = 'u32[72,128]{1,0:T(1,128)}', space=vmem, size = 0x9000, scoped, tag = 'internal scratch']
  #allocation2 [shape = 'f32[8,32]{1,0:T(8,128)}', space=vmem, size = 0x1000, scoped, tag = 'scratch operand']
  #allocation3 [shape = 'f32[8,32]{1,0:T(8,128)}', space=vmem, size = 0x1000, scoped, tag = 'scratch operand']
  %s0 = inlined_call_operand.hbm [shape: f32[2,8,32], index: 0, kind: input, shape index: {}]
  %s1 = inlined_call_operand.hbm [shape: f32[1,32,32], index: 1, kind: input, shape index: {}]
  %s2 = inlined_call_operand.hbm [shape: f32[1,32,32], index: 2, kind: input, shape index: {}]
  %s3 = inlined_call_operand.hbm [shape: f32[1,32,32], index: 3, kind: input, shape index: {}]
  %s4 = inlined_call_operand.vmem [shape: f32[1,1,32], index: 4, kind: input, shape index: {}]
  %s5 = inlined_call_operand.vmem [shape: f32[1,1,32], index: 5, kind: input, shape index: {}]
  %s6 = inlined_call_operand.hbm [shape: f32[2,1,8,32], index: 6, kind: output, shape index: {0}]
  %s7 = inlined_call_operand.hbm [shape: f32[2,4,8,8], index: 7, kind: output, shape index: {1}]
  %8 = xla_tuple %s6, %s7
  %s9 = sld [smem:[#allocation0]]
  $region85: #{tpu_custom_call.1} parent=0
    _
  %s11 = ssub.s32 1, %s9
  %s12 = scalar_select 0, %s11, %s9
  $region1: #{tpu_custom_call.1} parent=0
    #allocation4 [shape = 'u8[8192]{0}', space=vmem, size = 0x2000, scoped, tag = 'input window, operand 0']
    #allocation5 [shape = 's32[2]{0}', space=sflag, size = 0x8, scoped, tag = 'scoped memory for tpu_custom_call.1']
    #allocation6 [shape = 's32[2]{0}', space=sflag, size = 0x8, scoped, tag = 'scoped memory for tpu_custom_call.1']
    #allocation7 [shape = 'u8[16384]{0}', space=vmem, size = 0x4000, scoped, tag = 'input window, operand 1, single buffered']
    #allocation8 [shape = 's32[1]{0}', space=sflag, size = 0x4, scoped, tag = 'scoped memory for tpu_custom_call.1']
    #allocation9 [shape = 'u8[16384]{0}', space=vmem, size = 0x4000, scoped, tag = 'input window, operand 2, single buffered']
    #allocation10 [shape = 'u8[16384]{0}', space=vmem, size = 0x4000, scoped, tag = 'input window, operand 3, single buffered']
    #allocation11 [shape = 's32[1]{0}', space=sflag, size = 0x4, scoped, tag = 'scoped memory for tpu_custom_call.1']
    #allocation12 [shape = 'u8[8192]{0}', space=vmem, size = 0x2000, scoped, tag = 'output window, operand 0']
    #allocation13 [shape = 'u8[32768]{0}', space=vmem, size = 0x8000, scoped, tag = 'output window, operand 1']
    #allocation14 [shape = 's32[2]{0}', space=sflag, size = 0x8, scoped, tag = 'scoped memory for tpu_custom_call.1']
    %13 = vsyncpa [#allocation5], 0
    %s14 = scalar_lea.sflag [#allocation5], 1
    %15 = vsyncpa %s14, 0
    %16 = vsyncpa [#allocation8], 0
    %17 = vsyncpa [#allocation11], 0
    %18 = vsyncpa [#allocation6], 0
    %s19 = scalar_lea.sflag [#allocation6], 1
    %20 = vsyncpa %s19, 0
    %21 = vsyncpa [#allocation14], 0
    %s22 = scalar_lea.sflag [#allocation14], 1
    %23 = vsyncpa %s22, 0
    loop: start=0, step=1, limit=4
    $region2: #{tpu_custom_call.1} parent=1 // loop_pre_header
      _
    $region3: #{tpu_custom_call.1} parent=1 // loop_header
      %s25 = sphi 0, %s29
      %p26 = scmp.ge.s32.totalorder %s25, 4
      %s32 = sphi 0, %s51
      %s33 = sphi 0, %s47
      %s34 = sphi 0, %s43
      %s35 = sphi 0, %s32
      %s36 = sphi 0, %s33
      %s37 = sphi 0, %s34
      %s38 = sphi 0, %s35
      %s39 = sphi 0, %s36
      %s40 = sphi 0, %s37
      %s54 = sphi 0, %s56
      %s57 = sphi 0, %s54
      %s58 = sphi 0, %s57
      %s74 = sphi 0, %s58
      %s80 = sphi 0, %s82
      %s83 = sphi 0, %s80
      %s84 = sphi 0, %s83
      %s100 = sphi 0, %s84
      %s106 = sphi 0, %s108
      %s109 = sphi 0, %s106
      %s110 = sphi 0, %s109
      %s126 = sphi 0, %s110
      %s132 = sphi 0, %s134
      %s135 = sphi 0, %s132
      %s136 = sphi 0, %s135
      %s152 = sphi 0, %s136
      %s158 = sphi 0, %s160
      %s161 = sphi 0, %s158
      %s162 = sphi 0, %s161
      %s178 = sphi 0, %s162
      %s184 = sphi 0, %s186
      %s187 = sphi 0, %s184
      %s188 = sphi 0, %s187
      %s204 = sphi 0, %s188
      %s214 = sphi 0, %s216
      %s217 = sphi 0, %s214
      %s218 = sphi 0, %s217
      %s234 = sphi 0, %s218
      %s244 = sphi 0, %s246
      %s247 = sphi 0, %s244
      %s248 = sphi 0, %s247
      %s264 = sphi 0, %s248
    $region4: #{tpu_custom_call.1} parent=1 // loop_header_branch
      %28 = sbr.rel (%p26) target = $region8
    $region5: #{tpu_custom_call.1} parent=1 // loop_body
      %s30 = ssub.s32 %s25, 1
      %s31 = ssub.s32 %s25, 2
      %s41 = sadd.s32 1, %s34
      %p42 = scmp.ge.s32.totalorder %s41, 1
      %s43 = scalar_select %p42, 0, %s41
      %s44 = sadd.s32 1, %s33
      %s45 = scalar_select %p42, %s44, %s33
      %p46 = scmp.ge.s32.totalorder %s45, 2
      %s47 = scalar_select %p46, 0, %s45
      %s48 = sadd.s32 1, %s32
      %s49 = scalar_select %p46, %s48, %s32
      %p50 = scmp.ge.s32.totalorder %s49, 1
      %s51 = scalar_select %p50, 0, %s49
      %s52 = ssub.s32 %s33, %s47
      %p53 = scmp.eq.s32.totalorder %s52, 0
      %s55 = sadd.s32 %s54, 1
      %s56 = scalar_select %p53, %s54, %s55
      %p59 = pneg %p53
      %p60 = scmp.eq.s32.totalorder %s25, 1
      %p61 = por %p59, %p60
      %p62 = scmp.ne.s32.totalorder %s54, %s57
      %p63 = scmp.eq.s32.totalorder %s25, 0
      %p64 = por %p62, %p63
      %p65 = scmp.ne.s32.totalorder %s54, %s57
      %p66 = scmp.eq.s32.totalorder %s30, 1
      %p67 = por %p65, %p66
      %p68 = scmp.ne.s32.totalorder %s57, %s58
      %p69 = scmp.eq.s32.totalorder %s30, 0
      %p70 = por %p68, %p69
      %p71 = scmp.ne.s32.totalorder %s57, %s58
      %p72 = scmp.eq.s32.totalorder %s31, 1
      %p73 = por %p71, %p72
      %p75 = scmp.ne.s32.totalorder %s58, %s74
      %p76 = scmp.eq.s32.totalorder %s31, 0
      %p77 = por %p75, %p76
      %s78 = ssub.s32 %s32, %s51
      %p79 = scmp.eq.s32.totalorder %s78, 0
      %s81 = sadd.s32 %s80, 1
      %s82 = scalar_select %p79, %s80, %s81
      %p85 = pneg %p79
      %p86 = scmp.eq.s32.totalorder %s25, 1
      %p87 = por %p85, %p86
      %p88 = scmp.ne.s32.totalorder %s80, %s83
      %p89 = scmp.eq.s32.totalorder %s25, 0
      %p90 = por %p88, %p89
      %p91 = scmp.ne.s32.totalorder %s80, %s83
      %p92 = scmp.eq.s32.totalorder %s30, 1
      %p93 = por %p91, %p92
      %p94 = scmp.ne.s32.totalorder %s83, %s84
      %p95 = scmp.eq.s32.totalorder %s30, 0
      %p96 = por %p94, %p95
      %p97 = scmp.ne.s32.totalorder %s83, %s84
      %p98 = scmp.eq.s32.totalorder %s31, 1
      %p99 = por %p97, %p98
      %p101 = scmp.ne.s32.totalorder %s84, %s100
      %p102 = scmp.eq.s32.totalorder %s31, 0
      %p103 = por %p101, %p102
      %s104 = ssub.s32 %s32, %s51
      %p105 = scmp.eq.s32.totalorder %s104, 0
      %s107 = sadd.s32 %s106, 1
      %s108 = scalar_select %p105, %s106, %s107
      %p111 = pneg %p105
      %p112 = scmp.eq.s32.totalorder %s25, 1
      %p113 = por %p111, %p112
      %p114 = scmp.ne.s32.totalorder %s106, %s109
      %p115 = scmp.eq.s32.totalorder %s25, 0
      %p116 = por %p114, %p115
      %p117 = scmp.ne.s32.totalorder %s106, %s109
      %p118 = scmp.eq.s32.totalorder %s30, 1
      %p119 = por %p117, %p118
      %p120 = scmp.ne.s32.totalorder %s109, %s110
      %p121 = scmp.eq.s32.totalorder %s30, 0
      %p122 = por %p120, %p121
      %p123 = scmp.ne.s32.totalorder %s109, %s110
      %p124 = scmp.eq.s32.totalorder %s31, 1
      %p125 = por %p123, %p124
      %p127 = scmp.ne.s32.totalorder %s110, %s126
      %p128 = scmp.eq.s32.totalorder %s31, 0
      %p129 = por %p127, %p128
      %s130 = ssub.s32 %s32, %s51
      %p131 = scmp.eq.s32.totalorder %s130, 0
      %s133 = sadd.s32 %s132, 1
      %s134 = scalar_select %p131, %s132, %s133
      %p137 = pneg %p131
      %p138 = scmp.eq.s32.totalorder %s25, 1
      %p139 = por %p137, %p138
      %p140 = scmp.ne.s32.totalorder %s132, %s135
      %p141 = scmp.eq.s32.totalorder %s25, 0
      %p142 = por %p140, %p141
      %p143 = scmp.ne.s32.totalorder %s132, %s135
      %p144 = scmp.eq.s32.totalorder %s30, 1
      %p145 = por %p143, %p144
      %p146 = scmp.ne.s32.totalorder %s135, %s136
      %p147 = scmp.eq.s32.totalorder %s30, 0
      %p148 = por %p146, %p147
      %p149 = scmp.ne.s32.totalorder %s135, %s136
      %p150 = scmp.eq.s32.totalorder %s31, 1
      %p151 = por %p149, %p150
      %p153 = scmp.ne.s32.totalorder %s136, %s152
      %p154 = scmp.eq.s32.totalorder %s31, 0
      %p155 = por %p153, %p154
      %s156 = ssub.s32 %s32, %s51
      %p157 = scmp.eq.s32.totalorder %s156, 0
      %s159 = sadd.s32 %s158, 1
      %s160 = scalar_select %p157, %s158, %s159
      %p163 = pneg %p157
      %p164 = scmp.eq.s32.totalorder %s25, 1
      %p165 = por %p163, %p164
      %p166 = scmp.ne.s32.totalorder %s158, %s161
      %p167 = scmp.eq.s32.totalorder %s25, 0
      %p168 = por %p166, %p167
      %p169 = scmp.ne.s32.totalorder %s158, %s161
      %p170 = scmp.eq.s32.totalorder %s30, 1
      %p171 = por %p169, %p170
      %p172 = scmp.ne.s32.totalorder %s161, %s162
      %p173 = scmp.eq.s32.totalorder %s30, 0
      %p174 = por %p172, %p173
      %p175 = scmp.ne.s32.totalorder %s161, %s162
      %p176 = scmp.eq.s32.totalorder %s31, 1
      %p177 = por %p175, %p176
      %p179 = scmp.ne.s32.totalorder %s162, %s178
      %p180 = scmp.eq.s32.totalorder %s31, 0
      %p181 = por %p179, %p180
      %s182 = ssub.s32 %s32, %s51
      %p183 = scmp.eq.s32.totalorder %s182, 0
      %s185 = sadd.s32 %s184, 1
      %s186 = scalar_select %p183, %s184, %s185
      %p189 = pneg %p183
      %p190 = scmp.eq.s32.totalorder %s25, 1
      %p191 = por %p189, %p190
      %p192 = scmp.ne.s32.totalorder %s184, %s187
      %p193 = scmp.eq.s32.totalorder %s25, 0
      %p194 = por %p192, %p193
      %p195 = scmp.ne.s32.totalorder %s184, %s187
      %p196 = scmp.eq.s32.totalorder %s30, 1
      %p197 = por %p195, %p196
      %p198 = scmp.ne.s32.totalorder %s187, %s188
      %p199 = scmp.eq.s32.totalorder %s30, 0
      %p200 = por %p198, %p199
      %p201 = scmp.ne.s32.totalorder %s187, %s188
      %p202 = scmp.eq.s32.totalorder %s31, 1
      %p203 = por %p201, %p202
      %p205 = scmp.ne.s32.totalorder %s188, %s204
      %p206 = scmp.eq.s32.totalorder %s31, 0
      %p207 = por %p205, %p206
      %s208 = ssub.s32 %s33, %s47
      %s209 = ssub.s32 %s32, %s51
      %s210 = sor.u32 %s208, %s209
      %s211 = ssub.s32 %s34, %s43
      %s212 = sor.u32 %s210, %s211
      %p213 = scmp.eq.s32.totalorder %s212, 0
      %s215 = sadd.s32 %s214, 1
      %s216 = scalar_select %p213, %s214, %s215
      %p219 = pneg %p213
      %p220 = scmp.eq.s32.totalorder %s25, 1
      %p221 = por %p219, %p220
      %p222 = scmp.ne.s32.totalorder %s214, %s217
      %p223 = scmp.eq.s32.totalorder %s25, 0
      %p224 = por %p222, %p223
      %p225 = scmp.ne.s32.totalorder %s214, %s217
      %p226 = scmp.eq.s32.totalorder %s30, 1
      %p227 = por %p225, %p226
      %p228 = scmp.ne.s32.totalorder %s217, %s218
      %p229 = scmp.eq.s32.totalorder %s30, 0
      %p230 = por %p228, %p229
      %p231 = scmp.ne.s32.totalorder %s217, %s218
      %p232 = scmp.eq.s32.totalorder %s31, 1
      %p233 = por %p231, %p232
      %p235 = scmp.ne.s32.totalorder %s218, %s234
      %p236 = scmp.eq.s32.totalorder %s31, 0
      %p237 = por %p235, %p236
      %s238 = ssub.s32 %s33, %s47
      %s239 = ssub.s32 %s32, %s51
      %s240 = sor.u32 %s238, %s239
      %s241 = ssub.s32 %s34, %s43
      %s242 = sor.u32 %s240, %s241
      %p243 = scmp.eq.s32.totalorder %s242, 0
      %s245 = sadd.s32 %s244, 1
      %s246 = scalar_select %p243, %s244, %s245
      %p249 = pneg %p243
      %p250 = scmp.eq.s32.totalorder %s25, 1
      %p251 = por %p249, %p250
      %p252 = scmp.ne.s32.totalorder %s244, %s247
      %p253 = scmp.eq.s32.totalorder %s25, 0
      %p254 = por %p252, %p253
      %p255 = scmp.ne.s32.totalorder %s244, %s247
      %p256 = scmp.eq.s32.totalorder %s30, 1
      %p257 = por %p255, %p256
      %p258 = scmp.ne.s32.totalorder %s247, %s248
      %p259 = scmp.eq.s32.totalorder %s30, 0
      %p260 = por %p258, %p259
      %p261 = scmp.ne.s32.totalorder %s247, %s248
      %p262 = scmp.eq.s32.totalorder %s31, 1
      %p263 = por %p261, %p262
      %p265 = scmp.ne.s32.totalorder %s248, %s264
      %p266 = scmp.eq.s32.totalorder %s31, 0
      %p267 = por %p265, %p266
      %p268 = scmp.le.s32.totalorder 1, %s25
      %p269 = scmp.lt.s32.totalorder %s25, 3
      %p270 = pnand %p268, %p269
      %p271 = pneg %p270
      // Predicated region
      $region9: #{tpu_custom_call.1} parent=5 // pred_check
        _
      $region10: #{tpu_custom_call.1} parent=5 // pred_check_branch
        %273 = sbr.rel (%p270) target = $region12
      $region11: #{tpu_custom_call.1} parent=5 // pred_region
        %s274 = ssub.s32 %s25, 1
        // Predicated region
        $region13: #{tpu_custom_call.1} parent=11 // pred_check
          %p275 = pneg %p96
        $region14: #{tpu_custom_call.1} parent=11 // pred_check_branch
          %277 = sbr.rel (%p275) target = $region16
        $region15: #{tpu_custom_call.1} parent=11 // pred_region
          %279 = vsyncadd [#allocation8], 0
          %s280 = smul.addr %s35, 4
          %s281 = smul.addr %s280, 8
          %s282 = scalar_lea.hbm %s1, %s281
          %s283 = sshll.u32 %s282, 4
          %s284 = int_to_ptr.hbm [resolvable:$true] %s283
          %s285 = sshll.u32 [#allocation7], 4
          %s286 = int_to_ptr.vmem [resolvable:$true] %s285
          %291 = dma.hbm_to_vmem [thread:$0]  %s284, 512, %s286, [#allocation8], 128, 128, 8
        $region16: #{tpu_custom_call.1} parent=11 // pred_fallthru
          _
        // Predicated region
        $region17: #{tpu_custom_call.1} parent=11 // pred_check
          %p292 = pneg %p122
        $region18: #{tpu_custom_call.1} parent=11 // pred_check_branch
          %294 = sbr.rel (%p292) target = $region20
        $region19: #{tpu_custom_call.1} parent=11 // pred_region
          %296 = vsyncadd [#allocation8], 0
          %s297 = smul.addr %s35, 4
          %s298 = smul.addr %s297, 8
          %s299 = scalar_lea.hbm %s2, %s298
          %s300 = sshll.u32 %s299, 4
          %s301 = int_to_ptr.hbm [resolvable:$true] %s300
          %s302 = sshll.u32 [#allocation9], 4
          %s303 = int_to_ptr.vmem [resolvable:$true] %s302
          %308 = dma.hbm_to_vmem [thread:$0]  %s301, 512, %s303, [#allocation8], 128, 128, 8
        $region20: #{tpu_custom_call.1} parent=11 // pred_fallthru
          _
        // Predicated region
        $region21: #{tpu_custom_call.1} parent=11 // pred_check
          %p309 = pneg %p148
        $region22: #{tpu_custom_call.1} parent=11 // pred_check_branch
          %311 = sbr.rel (%p309) target = $region24
        $region23: #{tpu_custom_call.1} parent=11 // pred_region
          %313 = vsyncadd [#allocation11], 0
          %s314 = smul.addr %s35, 4
          %s315 = smul.addr %s314, 8
          %s316 = scalar_lea.hbm %s3, %s315
          %s317 = sshll.u32 %s316, 4
          %s318 = int_to_ptr.hbm [resolvable:$true] %s317
          %s319 = sshll.u32 [#allocation10], 4
          %s320 = int_to_ptr.vmem [resolvable:$true] %s319
          %325 = dma.hbm_to_vmem [thread:$0]  %s318, 512, %s320, [#allocation11], 128, 128, 8
        $region24: #{tpu_custom_call.1} parent=11 // pred_fallthru
          _
        // Predicated region
        $region25: #{tpu_custom_call.1} parent=11 // pred_check
          %p326 = pneg %p174
        $region26: #{tpu_custom_call.1} parent=11 // pred_check_branch
          %328 = sbr.rel (%p326) target = $region28
        $region27: #{tpu_custom_call.1} parent=11 // pred_region
          %p329 = scmp.lt.s32.totalorder %s35, 0
          %s330 = scalar_select %p329, %s35, 0
          %s331 = scalar_lea.vmem %s4, %s330
        $region28: #{tpu_custom_call.1} parent=11 // pred_fallthru
          _
        // Predicated region
        $region29: #{tpu_custom_call.1} parent=11 // pred_check
          %p332 = pneg %p200
        $region30: #{tpu_custom_call.1} parent=11 // pred_check_branch
          %334 = sbr.rel (%p332) target = $region32
        $region31: #{tpu_custom_call.1} parent=11 // pred_region
          %p335 = scmp.lt.s32.totalorder %s35, 0
          %s336 = scalar_select %p335, %s35, 0
          %s337 = scalar_lea.vmem %s5, %s336
        $region32: #{tpu_custom_call.1} parent=11 // pred_fallthru
          _
      $region12: #{tpu_custom_call.1} parent=5 // pred_fallthru
        _
      %p338 = scmp.lt.s32.totalorder %s25, 2
      // Predicated region
      $region33: #{tpu_custom_call.1} parent=5 // pred_check
        %p339 = pneg %p338
      $region34: #{tpu_custom_call.1} parent=5 // pred_check_branch
        %341 = sbr.rel (%p339) target = $region36
      $region35: #{tpu_custom_call.1} parent=5 // pred_region
        // Predicated region
        $region37: #{tpu_custom_call.1} parent=35 // pred_check
          %p342 = pneg %p64
        $region38: #{tpu_custom_call.1} parent=35 // pred_check_branch
          %344 = sbr.rel (%p342) target = $region40
        $region39: #{tpu_custom_call.1} parent=35 // pred_region
          %s345 = sand.u32 %s54, 1
          %s346 = scalar_lea.sflag [#allocation5], %s345
          %s347 = sand.u32 %s54, 1
          %s348 = smul.addr %s347, 8
          %s349 = scalar_lea.vmem [#allocation4], %s348
          %351 = vsyncadd %s346, 0
          %s352 = smul.addr %s33, 8
          %s353 = scalar_lea.hbm %s0, %s352
          %s355 = sshll.u32 %s353, 4
          %s356 = int_to_ptr.hbm [resolvable:$true] %s355
          %s357 = sshll.u32 %s349, 4
          %s358 = int_to_ptr.vmem [resolvable:$true] %s357
          %360 = dma.hbm_to_vmem [thread:$0]  %s356, 128, %s358, %s346
        $region40: #{tpu_custom_call.1} parent=35 // pred_fallthru
          _
      $region36: #{tpu_custom_call.1} parent=5 // pred_fallthru
        _
      %p361 = scmp.le.s32.totalorder 1, %s25
      %p362 = scmp.lt.s32.totalorder %s25, 3
      %p363 = pnand %p361, %p362
      %p364 = pneg %p363
      // Predicated region
      $region41: #{tpu_custom_call.1} parent=5 // pred_check
        _
      $region42: #{tpu_custom_call.1} parent=5 // pred_check_branch
        %366 = sbr.rel (%p363) target = $region44
      $region43: #{tpu_custom_call.1} parent=5 // pred_region
        %s367 = ssub.s32 %s25, 1
        %s368 = sand.u32 %s57, 1
        %s369 = scalar_lea.sflag [#allocation5], %s368
        %s370 = sand.u32 %s57, 1
        %s371 = smul.addr %s370, 8
        %s372 = scalar_lea.vmem [#allocation4], %s371
        // Predicated region
        $region45: #{tpu_custom_call.1} parent=43 // pred_check
          %p373 = pneg %p70
        $region46: #{tpu_custom_call.1} parent=43 // pred_check_branch
          %375 = sbr.rel (%p373) target = $region48
        $region47: #{tpu_custom_call.1} parent=43 // pred_region
          %377 = dma.done %s369, 128
        $region48: #{tpu_custom_call.1} parent=43 // pred_fallthru
          _
        // Predicated region
        $region49: #{tpu_custom_call.1} parent=43 // pred_check
          %p378 = pneg %p96
        $region50: #{tpu_custom_call.1} parent=43 // pred_check_branch
          %380 = sbr.rel (%p378) target = $region52
        $region51: #{tpu_custom_call.1} parent=43 // pred_region
          %382 = dma.done [#allocation8], 512
        $region52: #{tpu_custom_call.1} parent=43 // pred_fallthru
          _
        // Predicated region
        $region53: #{tpu_custom_call.1} parent=43 // pred_check
          %p383 = pneg %p122
        $region54: #{tpu_custom_call.1} parent=43 // pred_check_branch
          %385 = sbr.rel (%p383) target = $region56
        $region55: #{tpu_custom_call.1} parent=43 // pred_region
          %387 = dma.done [#allocation8], 512
        $region56: #{tpu_custom_call.1} parent=43 // pred_fallthru
          _
        // Predicated region
        $region57: #{tpu_custom_call.1} parent=43 // pred_check
          %p388 = pneg %p148
        $region58: #{tpu_custom_call.1} parent=43 // pred_check_branch
          %390 = sbr.rel (%p388) target = $region60
        $region59: #{tpu_custom_call.1} parent=43 // pred_region
          %392 = dma.done [#allocation11], 512
        $region60: #{tpu_custom_call.1} parent=43 // pred_fallthru
          _
        %s393 = sand.u32 %s57, 1
        %s394 = scalar_lea.sflag [#allocation5], %s393
        %s395 = sand.u32 %s57, 1
        %s396 = smul.addr %s395, 8
        %s397 = scalar_lea.vmem [#allocation4], %s396
        %p398 = pneg %p70
        %p399 = pneg %p67
        %p400 = pneg %p96
        %p401 = pneg %p93
        %p402 = pneg %p122
        %p403 = pneg %p119
        %p404 = pneg %p148
        %p405 = pneg %p145
        %p406 = scmp.lt.s32.totalorder %s35, 0
        %s407 = scalar_select %p406, %s35, 0
        %s408 = scalar_lea.vmem %s4, %s407
        %p409 = pneg %p174
        %p410 = pneg %p171
        %p411 = scmp.lt.s32.totalorder %s35, 0
        %s412 = scalar_select %p411, %s35, 0
        %s413 = scalar_lea.vmem %s5, %s412
        %p414 = pneg %p200
        %p415 = pneg %p197
        %p416 = pneg %p230
        %p417 = pneg %p227
        %s418 = sand.u32 %s217, 1
        %s419 = scalar_lea.sflag [#allocation6], %s418
        %s420 = sand.u32 %s217, 1
        %s421 = smul.addr %s420, 8
        %s422 = scalar_lea.vmem [#allocation12], %s421
        %p423 = pneg %p260
        %p424 = pneg %p257
        %s425 = sand.u32 %s247, 1
        %s426 = scalar_lea.sflag [#allocation14], %s425
        %s427 = sand.u32 %s247, 1
        %s428 = smul.addr %s427, 32
        %s429 = scalar_lea.vmem [#allocation13], %s428
        %p430 = scmp.lt.s32.totalorder %s35, 0
        %s431 = scalar_select %p430, %s35, 0
        %s432 = scalar_lea.vmem %s4, %s431
        %p433 = scmp.lt.s32.totalorder %s35, 0
        %s434 = scalar_select %p433, %s35, 0
        %s435 = scalar_lea.vmem %s5, %s434
        %s436 = smul.u32 4, %s35
        %p437 = scmp.eq.s32.totalorder %s37, 0
        // Predicated region
        $region61: #{tpu_custom_call.1} parent=43 // pred_check
          %p438 = pneg %p437
        $region62: #{tpu_custom_call.1} parent=43 // pred_check_branch
          %440 = sbr.rel (%p438) target = $region64
        $region63: #{tpu_custom_call.1} parent=43 // pred_region
          %v441 = vld [vmem:[%s372] sm:$0xff]
          %v442 = vld [vmem:[#allocation9] sm:$0xff]
          %v443 = vld [vmem:[#allocation9 + $0x8] sm:$0xff]
          %v444 = vld [vmem:[#allocation9 + $0x10] sm:$0xff]
          %v445 = vld [vmem:[#allocation9 + $0x18] sm:$0xff]
          %vm446 = vcmask 261120
          %v448 = vsel %vm446, %v441, 0
          %450 = vmatpush.msra.mxu0 0.0
          %451 = vmatpush.msra.mxu0 0.0
          %452 = vmatpush.msra.mxu0 0.0
          %453 = vmatpush.msra.mxu0 0.0
          %454 = vmatpush.msra.mxu0 0.0
          %455 = vmatpush.msra.mxu0 0.0
          %456 = vmatpush.msra.mxu0 0.0
          %457 = vmatpush.msra.mxu0 0.0
          %458 = vmatpush.msra.mxu0 0.0
          %459 = vmatpush.msra.mxu0 0.0
          %460 = vmatpush.msra.mxu0 0.0
          %461 = vmatpush.msra.mxu0 0.0
          %462 = vmatpush.msra.mxu0 %v445
          %463 = vmatpush.msra.mxu0 %v444
          %464 = vmatpush.msra.mxu0 %v443
          %465 = vmatpush.msra.mxu0 %v442
          %466 = vmatmul.f32.gmra.mxu0 %v448
          %v467 = vpop.f32.mrf.mxu0
          %v468 = vadd.f32 0.0, %v467
          %469 = vdwg.mxu0
          %v470 = vld [vmem:[#allocation10] sm:$0xff]
          %v471 = vld [vmem:[#allocation10 + $0x8] sm:$0xff]
          %v472 = vld [vmem:[#allocation10 + $0x10] sm:$0xff]
          %v473 = vld [vmem:[#allocation10 + $0x18] sm:$0xff]
          %v474 = vld [vmem:[%s435] sm:$0x1]
          %v476 = vperm.slane %v474, 0
          %478 = vmatpush.msra.mxu0 0.0
          %479 = vmatpush.msra.mxu0 0.0
          %480 = vmatpush.msra.mxu0 0.0
          %481 = vmatpush.msra.mxu0 0.0
          %482 = vmatpush.msra.mxu0 0.0
          %483 = vmatpush.msra.mxu0 0.0
          %484 = vmatpush.msra.mxu0 0.0
          %485 = vmatpush.msra.mxu0 0.0
          %486 = vmatpush.msra.mxu0 0.0
          %487 = vmatpush.msra.mxu0 0.0
          %488 = vmatpush.msra.mxu0 0.0
          %489 = vmatpush.msra.mxu0 0.0
          %490 = vmatpush.msra.mxu0 %v473
          %491 = vmatpush.msra.mxu0 %v472
          %492 = vmatpush.msra.mxu0 %v471
          %493 = vmatpush.msra.mxu0 %v470
          %494 = vmatmul.f32.gmra.mxu0 %v448
          %v495 = vpop.f32.mrf.mxu0
          %v496 = vadd.f32 %v476, %v495
          %497 = vdwg.mxu0
          %498 = vst.msk [vmem:[#allocation2] sm:$0xff] %vm446, %v468
          %499 = vst.msk [vmem:[#allocation3] sm:$0xff] %vm446, %v496
        $region64: #{tpu_custom_call.1} parent=43 // pred_fallthru
          _
        %s500 = smul.u32 %s37, 8
        %s501 = scalar_lea.vmem %s372, %s500 [#allocation4]
        %v502 = vld [vmem:[%s501] sm:$0xff]
        %v503 = vld [vmem:[#allocation7] sm:$0xff]
        %v504 = vld [vmem:[#allocation7 + $0x8] sm:$0xff]
        %v505 = vld [vmem:[#allocation7 + $0x10] sm:$0xff]
        %v506 = vld [vmem:[#allocation7 + $0x18] sm:$0xff]
        %v507 = vld [vmem:[%s432] sm:$0x1]
        %v509 = vperm.slane %v507, 0
        %vm511 = vcmask 261120
        %v513 = vsel %vm511, %v502, 0
        %515 = vmatpush.msra.mxu0 0.0
        %516 = vmatpush.msra.mxu0 0.0
        %517 = vmatpush.msra.mxu0 0.0
        %518 = vmatpush.msra.mxu0 0.0
        %519 = vmatpush.msra.mxu0 0.0
        %520 = vmatpush.msra.mxu0 0.0
        %521 = vmatpush.msra.mxu0 0.0
        %522 = vmatpush.msra.mxu0 0.0
        %523 = vmatpush.msra.mxu0 0.0
        %524 = vmatpush.msra.mxu0 0.0
        %525 = vmatpush.msra.mxu0 0.0
        %526 = vmatpush.msra.mxu0 0.0
        %527 = vmatpush.msra.mxu0 %v506
        %528 = vmatpush.msra.mxu0 %v505
        %529 = vmatpush.msra.mxu0 %v504
        %530 = vmatpush.msra.mxu0 %v503
        %531 = vmatmul.f32.gmra.mxu0 %v513
        %v532 = vpop.f32.mrf.mxu0
        %v533 = vadd.f32 %v509, %v532
        %534 = vdwg.mxu0
        %v535 = vld [vmem:[#allocation2] sm:$0xff]
        %v536 = vld [vmem:[#allocation3] sm:$0xff]
        %vm537 = vcmask 64512
        %v539 = vsel %vm537, %v533, 0
        %v542 = vsel %vm537, %v535, 0
        %544 = vmatpush.xpose.msra.mxu0 0.0
        %545 = vmatpush.xpose.msra.mxu0 0.0
        %546 = vmatpush.xpose.msra.mxu0 0.0
        %547 = vmatpush.xpose.msra.mxu0 0.0
        %548 = vmatpush.xpose.msra.mxu0 0.0
        %549 = vmatpush.xpose.msra.mxu0 0.0
        %550 = vmatpush.xpose.msra.mxu0 0.0
        %551 = vmatpush.xpose.msra.mxu0 0.0
        %552 = vmatpush.xpose.msra.mxu0 0.0
        %553 = vmatpush.xpose.msra.mxu0 0.0
        %554 = vmatpush.xpose.msra.mxu0 0.0
        %555 = vmatpush.xpose.msra.mxu0 0.0
        %556 = vmatpush.xpose.msra.mxu0 0.0
        %557 = vmatpush.xpose.msra.mxu0 0.0
        %558 = vmatpush.xpose.msra.mxu0 0.0
        %559 = vmatpush.xpose.msra.mxu0 %v542
        %560 = vmatmul.f32.gmra.mxu0 %v539
        %v561 = vpop.f32.mrf.mxu0
        %v562 = vadd.f32 0.0, %v561
        %563 = vdwg.mxu0
        %v564 = vsel %vm537, %v562, -inf
        %565 = vmax.xlane.f32.xlu0 %v564
        %v566 = vpop.xlane.xlu0 %565
        %v567 = vsub.f32 %v562, %v566
        %v568 = vmul.f32 %v567, 1.442695
        %v569 = vpow.pop %v568
        %v570 = vsel %vm537, %v569, 0.0
        %571 = vadd.xlane.f32.xlu0 %v570
        %v572 = vpop.xlane.xlu0 %571
        %v573 = vrcp.pop %v572
        %v574 = vmul.f32 %v572, %v573
        %v575 = vsub.f32 1.0, %v574
        %v576 = vmul.f32 %v573, %v575
        %v577 = vadd.f32 %v573, %v576
        %vm578 = vweird.f32 %v572
        %vm579 = vweird.f32 %v573
        %vm580 = vmor %vm578, %vm579
        %v581 = vsel %vm580, %v573, %v577
        %v582 = vand.u32 2147483647, %v572
        %vm583 = vcmp.eq.f32.partialorder %v582, 8.507059e+37
        %v584 = vand.u32 %v572, 2147483648
        %v585 = vor.u32 1.1754944e-38, %v584
        %v586 = vsel %vm583, %v585, %v581
        %v587 = vmul.f32 %v569, %v586
        %588 = vst.msk [vmem:[%s429] sm:$0xff] %vm537, %v587
        %v590 = vsel %vm537, %v587, 0
        %592 = vmatpush.msra.mxu0 0.0
        %593 = vmatpush.msra.mxu0 0.0
        %594 = vmatpush.msra.mxu0 0.0
        %595 = vmatpush.msra.mxu0 0.0
        %596 = vmatpush.msra.mxu0 0.0
        %597 = vmatpush.msra.mxu0 0.0
        %598 = vmatpush.msra.mxu0 0.0
        %599 = vmatpush.msra.mxu0 0.0
        %600 = vmatpush.msra.mxu0 0.0
        %601 = vmatpush.msra.mxu0 0.0
        %602 = vmatpush.msra.mxu0 0.0
        %603 = vmatpush.msra.mxu0 0.0
        %604 = vmatpush.msra.mxu0 0.0
        %605 = vmatpush.msra.mxu0 0.0
        %606 = vmatpush.msra.mxu0 0.0
        %607 = vmatpush.msra.mxu0 %v536
        %608 = vmatmul.f32.gmra.mxu0 %v590
        %v609 = vpop.f32.mrf.mxu0
        %v610 = vadd.f32 0.0, %v609
        %611 = vdwg.mxu0
        %612 = vrot.lane.b32.xlu0 %v533, 120
        %v613 = vpop.permute.xlu0 %612
        %614 = vrot.lane.b32.xlu0 %v535, 120
        %v615 = vpop.permute.xlu0 %614
        %v616 = vsel %vm537, %v613, 0
        %v618 = vsel %vm537, %v615, 0
        %620 = vmatpush.xpose.msra.mxu0 0.0
        %621 = vmatpush.xpose.msra.mxu0 0.0
        %622 = vmatpush.xpose.msra.mxu0 0.0
        %623 = vmatpush.xpose.msra.mxu0 0.0
        %624 = vmatpush.xpose.msra.mxu0 0.0
        %625 = vmatpush.xpose.msra.mxu0 0.0
        %626 = vmatpush.xpose.msra.mxu0 0.0
        %627 = vmatpush.xpose.msra.mxu0 0.0
        %628 = vmatpush.xpose.msra.mxu0 0.0
        %629 = vmatpush.xpose.msra.mxu0 0.0
        %630 = vmatpush.xpose.msra.mxu0 0.0
        %631 = vmatpush.xpose.msra.mxu0 0.0
        %632 = vmatpush.xpose.msra.mxu0 0.0
        %633 = vmatpush.xpose.msra.mxu0 0.0
        %634 = vmatpush.xpose.msra.mxu0 0.0
        %635 = vmatpush.xpose.msra.mxu0 %v618
        %636 = vmatmul.f32.gmra.mxu0 %v616
        %v637 = vpop.f32.mrf.mxu0
        %v638 = vadd.f32 0.0, %v637
        %639 = vdwg.mxu0
        %v640 = vsel %vm537, %v638, -inf
        %641 = vmax.xlane.f32.xlu0 %v640
        %v642 = vpop.xlane.xlu0 %641
        %v643 = vsub.f32 %v638, %v642
        %v644 = vmul.f32 %v643, 1.442695
        %v645 = vpow.pop %v644
        %v646 = vsel %vm537, %v645, 0.0
        %647 = vadd.xlane.f32.xlu0 %v646
        %v648 = vpop.xlane.xlu0 %647
        %v649 = vrcp.pop %v648
        %v650 = vmul.f32 %v648, %v649
        %v651 = vsub.f32 1.0, %v650
        %v652 = vmul.f32 %v649, %v651
        %v653 = vadd.f32 %v649, %v652
        %vm654 = vweird.f32 %v648
        %vm655 = vweird.f32 %v649
        %vm656 = vmor %vm654, %vm655
        %v657 = vsel %vm656, %v649, %v653
        %v658 = vand.u32 2147483647, %v648
        %vm659 = vcmp.eq.f32.partialorder %v658, 8.507059e+37
        %v660 = vand.u32 %v648, 2147483648
        %v661 = vor.u32 1.1754944e-38, %v660
        %v662 = vsel %vm659, %v661, %v657
        %v663 = vmul.f32 %v645, %v662
        %s664 = scalar_lea.vmem %s429, 8 [#allocation13]
        %665 = vst.msk [vmem:[%s664] sm:$0xff] %vm537, %v663
        %667 = vrot.lane.b32.xlu0 %v536, 120
        %v668 = vpop.permute.xlu0 %667
        %v671 = vsel %vm537, %v663, 0
        %673 = vmatpush.msra.mxu0 0.0
        %674 = vmatpush.msra.mxu0 0.0
        %675 = vmatpush.msra.mxu0 0.0
        %676 = vmatpush.msra.mxu0 0.0
        %677 = vmatpush.msra.mxu0 0.0
        %678 = vmatpush.msra.mxu0 0.0
        %679 = vmatpush.msra.mxu0 0.0
        %680 = vmatpush.msra.mxu0 0.0
        %681 = vmatpush.msra.mxu0 0.0
        %682 = vmatpush.msra.mxu0 0.0
        %683 = vmatpush.msra.mxu0 0.0
        %684 = vmatpush.msra.mxu0 0.0
        %685 = vmatpush.msra.mxu0 0.0
        %686 = vmatpush.msra.mxu0 0.0
        %687 = vmatpush.msra.mxu0 0.0
        %688 = vmatpush.msra.mxu0 %v668
        %689 = vmatmul.f32.gmra.mxu0 %v671
        %v690 = vpop.f32.mrf.mxu0
        %v691 = vadd.f32 0.0, %v690
        %692 = vdwg.mxu0
        %693 = vrot.lane.b32.xlu0 %v533, 112
        %v694 = vpop.permute.xlu0 %693
        %695 = vrot.lane.b32.xlu0 %v535, 112
        %v696 = vpop.permute.xlu0 %695
        %v697 = vsel %vm537, %v694, 0
        %v699 = vsel %vm537, %v696, 0
        %701 = vmatpush.xpose.msra.mxu0 0.0
        %702 = vmatpush.xpose.msra.mxu0 0.0
        %703 = vmatpush.xpose.msra.mxu0 0.0
        %704 = vmatpush.xpose.msra.mxu0 0.0
        %705 = vmatpush.xpose.msra.mxu0 0.0
        %706 = vmatpush.xpose.msra.mxu0 0.0
        %707 = vmatpush.xpose.msra.mxu0 0.0
        %708 = vmatpush.xpose.msra.mxu0 0.0
        %709 = vmatpush.xpose.msra.mxu0 0.0
        %710 = vmatpush.xpose.msra.mxu0 0.0
        %711 = vmatpush.xpose.msra.mxu0 0.0
        %712 = vmatpush.xpose.msra.mxu0 0.0
        %713 = vmatpush.xpose.msra.mxu0 0.0
        %714 = vmatpush.xpose.msra.mxu0 0.0
        %715 = vmatpush.xpose.msra.mxu0 0.0
        %716 = vmatpush.xpose.msra.mxu0 %v699
        %717 = vmatmul.f32.gmra.mxu0 %v697
        %v718 = vpop.f32.mrf.mxu0
        %v719 = vadd.f32 0.0, %v718
        %720 = vdwg.mxu0
        %v721 = vsel %vm537, %v719, -inf
        %722 = vmax.xlane.f32.xlu0 %v721
        %v723 = vpop.xlane.xlu0 %722
        %v724 = vsub.f32 %v719, %v723
        %v725 = vmul.f32 %v724, 1.442695
        %v726 = vpow.pop %v725
        %v727 = vsel %vm537, %v726, 0.0
        %728 = vadd.xlane.f32.xlu0 %v727
        %v729 = vpop.xlane.xlu0 %728
        %v730 = vrcp.pop %v729
        %v731 = vmul.f32 %v729, %v730
        %v732 = vsub.f32 1.0, %v731
        %v733 = vmul.f32 %v730, %v732
        %v734 = vadd.f32 %v730, %v733
        %vm735 = vweird.f32 %v729
        %vm736 = vweird.f32 %v730
        %vm737 = vmor %vm735, %vm736
        %v738 = vsel %vm737, %v730, %v734
        %v739 = vand.u32 2147483647, %v729
        %vm740 = vcmp.eq.f32.partialorder %v739, 8.507059e+37
        %v741 = vand.u32 %v729, 2147483648
        %v742 = vor.u32 1.1754944e-38, %v741
        %v743 = vsel %vm740, %v742, %v738
        %v744 = vmul.f32 %v726, %v743
        %s745 = scalar_lea.vmem %s429, 16 [#allocation13]
        %746 = vst.msk [vmem:[%s745] sm:$0xff] %vm537, %v744
        %747 = vrot.lane.b32.xlu0 %v536, 112
        %v748 = vpop.permute.xlu0 %747
        %v751 = vsel %vm537, %v744, 0
        %753 = vmatpush.msra.mxu0 0.0
        %754 = vmatpush.msra.mxu0 0.0
        %755 = vmatpush.msra.mxu0 0.0
        %756 = vmatpush.msra.mxu0 0.0
        %757 = vmatpush.msra.mxu0 0.0
        %758 = vmatpush.msra.mxu0 0.0
        %759 = vmatpush.msra.mxu0 0.0
        %760 = vmatpush.msra.mxu0 0.0
        %761 = vmatpush.msra.mxu0 0.0
        %762 = vmatpush.msra.mxu0 0.0
        %763 = vmatpush.msra.mxu0 0.0
        %764 = vmatpush.msra.mxu0 0.0
        %765 = vmatpush.msra.mxu0 0.0
        %766 = vmatpush.msra.mxu0 0.0
        %767 = vmatpush.msra.mxu0 0.0
        %768 = vmatpush.msra.mxu0 %v748
        %769 = vmatmul.f32.gmra.mxu0 %v751
        %v770 = vpop.f32.mrf.mxu0
        %v771 = vadd.f32 0.0, %v770
        %772 = vdwg.mxu0
        %773 = vrot.lane.b32.xlu0 %v533, 104
        %v774 = vpop.permute.xlu0 %773
        %775 = vrot.lane.b32.xlu0 %v535, 104
        %v776 = vpop.permute.xlu0 %775
        %v777 = vsel %vm537, %v774, 0
        %v779 = vsel %vm537, %v776, 0
        %781 = vmatpush.xpose.msra.mxu0 0.0
        %782 = vmatpush.xpose.msra.mxu0 0.0
        %783 = vmatpush.xpose.msra.mxu0 0.0
        %784 = vmatpush.xpose.msra.mxu0 0.0
        %785 = vmatpush.xpose.msra.mxu0 0.0
        %786 = vmatpush.xpose.msra.mxu0 0.0
        %787 = vmatpush.xpose.msra.mxu0 0.0
        %788 = vmatpush.xpose.msra.mxu0 0.0
        %789 = vmatpush.xpose.msra.mxu0 0.0
        %790 = vmatpush.xpose.msra.mxu0 0.0
        %791 = vmatpush.xpose.msra.mxu0 0.0
        %792 = vmatpush.xpose.msra.mxu0 0.0
        %793 = vmatpush.xpose.msra.mxu0 0.0
        %794 = vmatpush.xpose.msra.mxu0 0.0
        %795 = vmatpush.xpose.msra.mxu0 0.0
        %796 = vmatpush.xpose.msra.mxu0 %v779
        %797 = vmatmul.f32.gmra.mxu0 %v777
        %v798 = vpop.f32.mrf.mxu0
        %v799 = vadd.f32 0.0, %v798
        %800 = vdwg.mxu0
        %v801 = vsel %vm537, %v799, -inf
        %802 = vmax.xlane.f32.xlu0 %v801
        %v803 = vpop.xlane.xlu0 %802
        %v804 = vsub.f32 %v799, %v803
        %v805 = vmul.f32 %v804, 1.442695
        %v806 = vpow.pop %v805
        %v807 = vsel %vm537, %v806, 0.0
        %808 = vadd.xlane.f32.xlu0 %v807
        %v809 = vpop.xlane.xlu0 %808
        %v810 = vrcp.pop %v809
        %v811 = vmul.f32 %v809, %v810
        %v812 = vsub.f32 1.0, %v811
        %v813 = vmul.f32 %v810, %v812
        %v814 = vadd.f32 %v810, %v813
        %vm815 = vweird.f32 %v809
        %vm816 = vweird.f32 %v810
        %vm817 = vmor %vm815, %vm816
        %v818 = vsel %vm817, %v810, %v814
        %v819 = vand.u32 2147483647, %v809
        %vm820 = vcmp.eq.f32.partialorder %v819, 8.507059e+37
        %v821 = vand.u32 %v809, 2147483648
        %v822 = vor.u32 1.1754944e-38, %v821
        %v823 = vsel %vm820, %v822, %v818
        %v824 = vmul.f32 %v806, %v823
        %s825 = scalar_lea.vmem %s429, 24 [#allocation13]
        %826 = vst.msk [vmem:[%s825] sm:$0xff] %vm537, %v824
        %827 = vrot.lane.b32.xlu0 %v536, 104
        %v828 = vpop.permute.xlu0 %827
        %v831 = vsel %vm537, %v824, 0
        %833 = vmatpush.msra.mxu0 0.0
        %834 = vmatpush.msra.mxu0 0.0
        %835 = vmatpush.msra.mxu0 0.0
        %836 = vmatpush.msra.mxu0 0.0
        %837 = vmatpush.msra.mxu0 0.0
        %838 = vmatpush.msra.mxu0 0.0
        %839 = vmatpush.msra.mxu0 0.0
        %840 = vmatpush.msra.mxu0 0.0
        %841 = vmatpush.msra.mxu0 0.0
        %842 = vmatpush.msra.mxu0 0.0
        %843 = vmatpush.msra.mxu0 0.0
        %844 = vmatpush.msra.mxu0 0.0
        %845 = vmatpush.msra.mxu0 0.0
        %846 = vmatpush.msra.mxu0 0.0
        %847 = vmatpush.msra.mxu0 0.0
        %848 = vmatpush.msra.mxu0 %v828
        %849 = vmatmul.f32.gmra.mxu0 %v831
        %v850 = vpop.f32.mrf.mxu0
        %v851 = vadd.f32 0.0, %v850
        %852 = vdwg.mxu0
        %854 = vrot.lane.b32.xlu0 %v691, 8
        %v855 = vpop.permute.xlu0 %854
        %858 = vrot.lane.b32.xlu0 %v771, 16
        %v859 = vpop.permute.xlu0 %858
        %862 = vrot.lane.b32.xlu0 %v851, 24
        %v863 = vpop.permute.xlu0 %862
        %v865 = vsel %vm537, %v610, %v855
        %vm866 = vcmask 130048
        %v867 = vsel %vm866, %v865, %v859
        %vm868 = vcmask 195584
        %v869 = vsel %vm868, %v867, %v863
        %870 = vst.msk [vmem:[%s422] sm:$0xff] %vm511, %v869
        %s871 = sand.u32 %s217, 1
        %s872 = scalar_lea.sflag [#allocation6], %s871
        %s873 = sand.u32 %s217, 1
        %s874 = smul.addr %s873, 8
        %s875 = scalar_lea.vmem [#allocation12], %s874
        %s876 = sand.u32 %s247, 1
        %s877 = scalar_lea.sflag [#allocation14], %s876
        %s878 = sand.u32 %s247, 1
        %s879 = smul.addr %s878, 32
        %s880 = scalar_lea.vmem [#allocation13], %s879
        // Predicated region
        $region65: #{tpu_custom_call.1} parent=43 // pred_check
          %p881 = pneg %p227
        $region66: #{tpu_custom_call.1} parent=43 // pred_check_branch
          %883 = sbr.rel (%p881) target = $region68
        $region67: #{tpu_custom_call.1} parent=43 // pred_region
          %885 = vsyncadd %s872, 0
          %s886 = sadd.s32 %s37, %s35
          %s887 = sadd.s32 %s886, %s36
          %s888 = smul.addr %s887, 8
          %s889 = scalar_lea.hbm %s6, %s888
          %s891 = sshll.u32 %s875, 4
          %s892 = int_to_ptr.vmem [resolvable:$true] %s891
          %s893 = sshll.u32 %s889, 4
          %s894 = int_to_ptr.hbm [resolvable:$true] %s893
          %896 = dma.vmem_to_hbm [thread:$0]  %s892, 128, %s894, %s872
        $region68: #{tpu_custom_call.1} parent=43 // pred_fallthru
          _
        // Predicated region
        $region69: #{tpu_custom_call.1} parent=43 // pred_check
          %p897 = pneg %p257
        $region70: #{tpu_custom_call.1} parent=43 // pred_check_branch
          %899 = sbr.rel (%p897) target = $region72
        $region71: #{tpu_custom_call.1} parent=43 // pred_region
          %s900 = smul.u32 4, %s35
          %902 = vsyncadd %s877, 0
          %s903 = sadd.s32 %s37, %s900
          %s904 = smul.addr %s36, 4
          %s905 = sadd.s32 %s903, %s904
          %s906 = smul.addr %s905, 8
          %s907 = scalar_lea.hbm %s7, %s906
          %s908 = sshll.u32 %s880, 4
          %s909 = int_to_ptr.vmem [resolvable:$true] %s908
          %s910 = sshll.u32 %s907, 4
          %s911 = int_to_ptr.hbm [resolvable:$true] %s910
          %916 = dma.vmem_to_hbm [thread:$0]  %s909, 512, %s911, %s877, 128, 128, 8
        $region72: #{tpu_custom_call.1} parent=43 // pred_fallthru
          _
      $region44: #{tpu_custom_call.1} parent=5 // pred_fallthru
        _
      %p917 = scmp.le.s32.totalorder 2, %s25
      // Predicated region
      $region73: #{tpu_custom_call.1} parent=5 // pred_check
        %p918 = pneg %p917
      $region74: #{tpu_custom_call.1} parent=5 // pred_check_branch
        %920 = sbr.rel (%p918) target = $region76
      $region75: #{tpu_custom_call.1} parent=5 // pred_region
        %s921 = ssub.s32 %s25, 2
        // Predicated region
        $region77: #{tpu_custom_call.1} parent=75 // pred_check
          %p922 = pneg %p233
        $region78: #{tpu_custom_call.1} parent=75 // pred_check_branch
          %924 = sbr.rel (%p922) target = $region80
        $region79: #{tpu_custom_call.1} parent=75 // pred_region
          %s925 = sand.u32 %s218, 1
          %s926 = scalar_lea.sflag [#allocation6], %s925
          %s927 = sand.u32 %s218, 1
          %s928 = smul.addr %s927, 8
          %s929 = scalar_lea.vmem [#allocation12], %s928
          %931 = dma.done %s926, 128
        $region80: #{tpu_custom_call.1} parent=75 // pred_fallthru
          _
        // Predicated region
        $region81: #{tpu_custom_call.1} parent=75 // pred_check
          %p932 = pneg %p263
        $region82: #{tpu_custom_call.1} parent=75 // pred_check_branch
          %934 = sbr.rel (%p932) target = $region84
        $region83: #{tpu_custom_call.1} parent=75 // pred_region
          %s935 = sand.u32 %s248, 1
          %s936 = scalar_lea.sflag [#allocation14], %s935
          %s937 = sand.u32 %s248, 1
          %s938 = smul.addr %s937, 32
          %s939 = scalar_lea.vmem [#allocation13], %s938
          %941 = dma.done %s936, 512
        $region84: #{tpu_custom_call.1} parent=75 // pred_fallthru
          _
      $region76: #{tpu_custom_call.1} parent=5 // pred_fallthru
        _
    $region6: #{tpu_custom_call.1} parent=1 // loop_footer
      %s29 = sadd.s32 1, %s25
    $region7: #{tpu_custom_call.1} parent=1 // loop_footer_branch
      %24 = sbr.rel target = $region3
    $region8: #{tpu_custom_call.1} parent=1 // loop_exit
      _
    %942 = vsyncpa [#allocation5], 1
    %s943 = scalar_lea.sflag [#allocation5], 1
    %944 = vsyncpa %s943, 1
    %945 = vsyncpa [#allocation8], 1
    %946 = vsyncpa [#allocation11], 1
    %947 = vsyncpa [#allocation6], 1
    %s948 = scalar_lea.sflag [#allocation6], 1
    %949 = vsyncpa %s948, 1
    %950 = vsyncpa [#allocation14], 1
    %s951 = scalar_lea.sflag [#allocation14], 1
    %952 = vsyncpa %s951, 1

</llo_original>
